<compile_context>
chip_gen: v7x
topology: tpu7x:2x2x1
jax: 0.10.0
libtpu: 0.0.40
codegen_flags: <defaults>
</compile_context>

<pallas_src>
import functools

import jax
import jax.numpy as jnp
from jax import lax
from jax.experimental import pallas as pl
from jax.experimental.pallas import tpu as pltpu


def _conv_kernel(w_ref, x_ref, o_ref, xp_ref, *,
                 k1, k2, stride, padding, H, W, Ho, Wo,
                 Hp, Ws, rpc, n_chunks, aligned_chunks):
    """Single-channel 2D cross-correlation for one batch block.

    w_ref  : (k1*k2,) f32 in SMEM               (flattened filter taps)
    x_ref  : (B_blk, H,  W )  input block in VMEM
    o_ref  : (B_blk, Ho, Wo)  output block in VMEM
    xp_ref : (B_blk, Hp, Ws)  row-padded scratch; image at lane offset 0,
                              columns [W, W+padding) and [Ws-padding, Ws)
                              are the (zeroed) right / wrapped-left padding.
    """
    B_blk = x_ref.shape[0]
    sdtype = xp_ref.dtype
    rc1 = (rpc - 1) * stride + 1          # stride-1 rows per output-row chunk

    # ---- stage the image into the scratch (lane offset 0, border-only zero) --
    # Zeroed every grid step: scratch is per-core and with "parallel" semantics
    # a program_id==0 guard would be unsafe; the border is tiny anyway.
    if padding > 0:
        xp_ref[:, 0:padding, :] = jnp.zeros((B_blk, padding, Ws), sdtype)
        xp_ref[:, padding + H:Hp, :] = jnp.zeros((B_blk, padding, Ws), sdtype)
        xp_ref[:, :, W:W + padding] = jnp.zeros((B_blk, Hp, padding), sdtype)
        xp_ref[:, :, Ws - padding:Ws] = jnp.zeros((B_blk, Hp, padding), sdtype)
    # Lane-aligned interior store (column offset 0); dtype cast hoisted here.
    xp_ref[:, padding:padding + H, 0:W] = x_ref[...].astype(sdtype)

    # ---- filter taps: SMEM scalar reads hoisted out of the chunk loop --------
    w_s = [w_ref[i] for i in range(k1 * k2)]
    # bias is structurally zero in the reference module (torch.zeros(1)) -> omitted.

    def process_chunk(i0):
        r0 = i0 * stride
        acc = None
        for u in range(k1):                                   # unrolled taps
            # One lane-aligned, full-width row-window load per kernel row.
            rows = xp_ref[:, pl.ds(r0 + u, rc1), :]
            if rows.dtype != jnp.float32:
                rows = rows.astype(jnp.float32)
            for v in range(k2):
                # Output col j must read scratch col j + (v - padding); with
                # jnp.roll semantics that is a roll by (padding - v).  The
                # wrap-around lanes land in the zeroed [Ws-padding, Ws) strip,
                # providing the left zero-padding for free.
                shift = (padding - v) % Ws
                tap = pltpu.roll(rows, shift, 2) if shift else rows
                term = w_s[u * k2 + v] * tap
                acc = term if acc is None else acc + term
        if stride == 1:
            out_vals = acc[:, :, :Wo]
        else:
            # Single decimation per chunk (stride-1 accumulate, then subsample).
            out_vals = acc[:, ::stride, ::stride][:, :, :Wo]
        o_ref[:, pl.ds(i0, rpc), :] = out_vals.astype(o_ref.dtype)

    if n_chunks == 1:
        process_chunk(0)                       # fully static single-chunk path
    else:
        def body(c, carry):
            i0 = c * rpc
            if Ho % rpc != 0:
                # Last chunk overlaps the previous one; overlapping rows are
                # simply rewritten with identical values.
                i0 = jnp.minimum(i0, Ho - rpc)
            if aligned_chunks:
                i0 = pl.multiple_of(i0, 8)
            process_chunk(i0)
            return carry
        lax.fori_loop(0, n_chunks, body, 0)


def conv_forward(x, K, stride=1, padding=0):
    """Matches Conv.forward: cross-correlation of x (mb,1,H,W) with K (k1,k2)."""
    mb, ch, H, W = x.shape
    assert ch == 1, "reference module's matmul only supports ch == 1"
    k1, k2 = K.shape
    Ho = (H - k1 + 2 * padding) // stride + 1
    Wo = (W - k2 + 2 * padding) // stride + 1
    Hp = H + 2 * padding
    Wp = W + 2 * padding
    Wo1 = Wp - k2 + 1                                  # stride-1 output width
    Ws = max(128, pl.cdiv(max(Wp, Wo1), 128) * 128)    # lane-rounded scratch width

    x3 = x.reshape(mb, H, W)                           # drop channel axis
    Kf = K.reshape(-1).astype(jnp.float32)             # flattened -> cheap SMEM

    sdtype = jnp.bfloat16 if x.dtype == jnp.bfloat16 else jnp.float32
    itemsize = x.dtype.itemsize
    s_itemsize = jnp.dtype(sdtype).itemsize

    # ---- generation-conditional VMEM budget / grid sizing --------------------
    try:
        vmem_cap = int(pltpu.get_tpu_info().vmem_capacity_bytes)
    except Exception:
        vmem_cap = 64 * 1024 * 1024                    # conservative fallback
    multi_tc = vmem_cap <= 96 * 1024 * 1024            # v7x: 64 MiB per-TC, 2 TCs
    if multi_tc:
        vmem_limit = min(48 * 1024 * 1024, (vmem_cap * 3) // 4)
    else:
        vmem_limit = min(64 * 1024 * 1024, (vmem_cap * 3) // 4)
    block_budget = (vmem_limit * 3) // 4

    # resident bytes per image: double-buffered in/out blocks + padded scratch
    per_img = 2 * H * W * itemsize + 2 * Ho * Wo * itemsize + Hp * Ws * s_itemsize
    b_cap = max(1, block_budget // max(per_img, 1))
    if multi_tc and mb >= 2:
        b_cap = min(b_cap, mb // 2)                    # keep >=2 parallel steps
    b_cap = min(b_cap, mb)
    divisors = [d for d in range(1, b_cap + 1) if mb % d == 0]
    if multi_tc:
        even = [d for d in divisors if (mb // d) % 2 == 0]
        B_blk = max(even) if even else max(divisors)
    else:
        B_blk = max(divisors)
    grid = (mb // B_blk,)
    # Graceful headroom if even a single image is large.
    vmem_limit = max(vmem_limit, min(vmem_cap, per_img * B_blk + (4 << 20)))

    # ---- output-row chunking: keep the f32 accumulator small -----------------
    row_bytes = 4 * B_blk * Ws                         # one f32 stride-1 acc row
    max_rc1 = max(1, (64 * 1024) // row_bytes)
    rpc = min(Ho, max(1, (max_rc1 - 1) // stride + 1))
    if rpc >= 8:
        rpc = (rpc // 8) * 8                           # sublane-aligned chunk starts
    n_chunks = pl.cdiv(Ho, rpc)
    aligned_chunks = (rpc % 8 == 0) and (Ho % 8 == 0)

    kernel = functools.partial(
        _conv_kernel, k1=k1, k2=k2, stride=stride, padding=padding,
        H=H, W=W, Ho=Ho, Wo=Wo, Hp=Hp, Ws=Ws,
        rpc=rpc, n_chunks=n_chunks, aligned_chunks=aligned_chunks)

    cost = pl.CostEstimate(
        flops=2 * mb * Ho * Wo * k1 * k2,
        transcendentals=0,
        bytes_accessed=itemsize * mb * (H * W + Ho * Wo) + 4 * k1 * k2)

    out = pl.pallas_call(
        kernel,
        out_shape=jax.ShapeDtypeStruct((mb, Ho, Wo), x.dtype),
        grid=grid,
        in_specs=[
            pl.BlockSpec(memory_space=pltpu.MemorySpace.SMEM),   # flattened taps
            pl.BlockSpec((B_blk, H, W), lambda b: (b, 0, 0)),    # x batch block
        ],
        out_specs=pl.BlockSpec((B_blk, Ho, Wo), lambda b: (b, 0, 0)),
        scratch_shapes=[pltpu.VMEM((B_blk, Hp, Ws), sdtype)],
        compiler_params=pltpu.CompilerParams(
            dimension_semantics=("parallel",),
            vmem_limit_bytes=int(vmem_limit)),
        cost_estimate=cost,
    )(Kf, x3)

    return out.reshape(mb, 1, Ho, Wo)


if __name__ == "__main__":
    key = jax.random.PRNGKey(0)
    kx, kk = jax.random.split(key)

    mb, ch, H, W = 2, 1, 16, 16
    k1, k2 = 3, 3
    stride, padding = 1, 1

    x = jax.random.normal(kx, (mb, ch, H, W), dtype=jnp.float32)
    K = jax.random.normal(kk, (k1, k2), dtype=jnp.float32)

    y = conv_forward(x, K, stride=stride, padding=padding)
    y = jax.block_until_ready(y)

    # Pure-JAX reference (cross-correlation, matching the PyTorch im2col path).
    y_ref = jax.lax.conv_general_dilated(
        x, K[None, None].astype(jnp.float32),
        window_strides=(stride, stride),
        padding=[(padding, padding), (padding, padding)],
        dimension_numbers=("NCHW", "OIHW", "NCHW"))
    assert y.shape == (mb, 1,
                       (H - k1 + 2 * padding) // stride + 1,
                       (W - k2 + 2 * padding) // stride + 1)
    assert jnp.allclose(y, y_ref, atol=1e-5, rtol=1e-5)

    print("KERNEL_OK")
</pallas_src>

<mosaic_0001>
module attributes {stable_mosaic.version = 11 : i64} {
  func.func @_conv_kernel(%arg0: i32, %arg1: memref<9xf32, #tpu.memory_space<smem>>, %arg2: memref<1x16x16xf32, #tpu.memory_space<vmem>>, %arg3: memref<1x16x16xf32, #tpu.memory_space<vmem>>, %arg4: memref<1x18x128xf32, #tpu.memory_space<vmem>>) attributes {dimension_semantics = [#tpu.dimension_semantics<parallel>], iteration_bounds = array<i64: 2>, scalar_prefetch = 0 : i64, scratch_operands = 1 : i64, tpu.core_type = #tpu.core_type<tc>, window_params = [{transform_indices = @transform_0, window_bounds = array<i64: 9>}, {transform_indices = @transform_1, window_bounds = array<i64: 1, 16, 16>}, {transform_indices = @transform_2, window_bounds = array<i64: 1, 16, 16>}]} {
    %cst = arith.constant 0.000000e+00 : f32
    %0 = vector.broadcast %cst : f32 to vector<1x1x128xf32>
    %c0 = arith.constant 0 : index
    %c0_0 = arith.constant 0 : index
    %c0_1 = arith.constant 0 : index
    %1 = vector.load %arg4[%c0, %c0_0, %c0_1] : memref<1x18x128xf32, #tpu.memory_space<vmem>>, vector<1x1x128xf32>
    tpu.vector_store %arg4[%c0, %c0_0, %c0_1], %0 {strides = array<i32>} : memref<1x18x128xf32, #tpu.memory_space<vmem>>, vector<1x1x128xf32>,
    %cst_2 = arith.constant 0.000000e+00 : f32
    %2 = vector.broadcast %cst_2 : f32 to vector<1x1x128xf32>
    %c0_3 = arith.constant 0 : index
    %c17 = arith.constant 17 : index
    %c0_4 = arith.constant 0 : index
    %3 = vector.load %arg4[%c0_3, %c17, %c0_4] : memref<1x18x128xf32, #tpu.memory_space<vmem>>, vector<1x1x128xf32>
    tpu.vector_store %arg4[%c0_3, %c17, %c0_4], %2 {strides = array<i32>} : memref<1x18x128xf32, #tpu.memory_space<vmem>>, vector<1x1x128xf32>,
    %cst_5 = arith.constant 0.000000e+00 : f32
    %4 = vector.broadcast %cst_5 : f32 to vector<1x18x1xf32>
    %c0_6 = arith.constant 0 : index
    %c0_7 = arith.constant 0 : index
    %c16 = arith.constant 16 : index
    %5 = vector.load %arg4[%c0_6, %c0_7, %c16] : memref<1x18x128xf32, #tpu.memory_space<vmem>>, vector<1x18x1xf32>
    tpu.vector_store %arg4[%c0_6, %c0_7, %c16], %4 {strides = array<i32>} : memref<1x18x128xf32, #tpu.memory_space<vmem>>, vector<1x18x1xf32>,
    %cst_8 = arith.constant 0.000000e+00 : f32
    %6 = vector.broadcast %cst_8 : f32 to vector<1x18x1xf32>
    %c0_9 = arith.constant 0 : index
    %c0_10 = arith.constant 0 : index
    %c127 = arith.constant 127 : index
    %7 = vector.load %arg4[%c0_9, %c0_10, %c127] : memref<1x18x128xf32, #tpu.memory_space<vmem>>, vector<1x18x1xf32>
    tpu.vector_store %arg4[%c0_9, %c0_10, %c127], %6 {strides = array<i32>} : memref<1x18x128xf32, #tpu.memory_space<vmem>>, vector<1x18x1xf32>,
    %c0_11 = arith.constant 0 : index
    %c0_12 = arith.constant 0 : index
    %c0_13 = arith.constant 0 : index
    %8 = vector.load %arg2[%c0_11, %c0_12, %c0_13] : memref<1x16x16xf32, #tpu.memory_space<vmem>>, vector<1x16x16xf32>
    %c0_14 = arith.constant 0 : index
    %c1 = arith.constant 1 : index
    %c0_15 = arith.constant 0 : index
    %9 = vector.load %arg4[%c0_14, %c1, %c0_15] : memref<1x18x128xf32, #tpu.memory_space<vmem>>, vector<1x16x16xf32>
    tpu.vector_store %arg4[%c0_14, %c1, %c0_15], %8 {strides = array<i32>} : memref<1x18x128xf32, #tpu.memory_space<vmem>>, vector<1x16x16xf32>,
    %c0_16 = arith.constant 0 : index
    %10 = memref.load %arg1[%c0_16] : memref<9xf32, #tpu.memory_space<smem>>
    %c1_17 = arith.constant 1 : index
    %11 = memref.load %arg1[%c1_17] : memref<9xf32, #tpu.memory_space<smem>>
    %c2 = arith.constant 2 : index
    %12 = memref.load %arg1[%c2] : memref<9xf32, #tpu.memory_space<smem>>
    %c3 = arith.constant 3 : index
    %13 = memref.load %arg1[%c3] : memref<9xf32, #tpu.memory_space<smem>>
    %c4 = arith.constant 4 : index
    %14 = memref.load %arg1[%c4] : memref<9xf32, #tpu.memory_space<smem>>
    %c5 = arith.constant 5 : index
    %15 = memref.load %arg1[%c5] : memref<9xf32, #tpu.memory_space<smem>>
    %c6 = arith.constant 6 : index
    %16 = memref.load %arg1[%c6] : memref<9xf32, #tpu.memory_space<smem>>
    %c7 = arith.constant 7 : index
    %17 = memref.load %arg1[%c7] : memref<9xf32, #tpu.memory_space<smem>>
    %c8 = arith.constant 8 : index
    %18 = memref.load %arg1[%c8] : memref<9xf32, #tpu.memory_space<smem>>
    %c0_18 = arith.constant 0 : index
    %c0_19 = arith.constant 0 : index
    %c0_20 = arith.constant 0 : index
    %19 = vector.load %arg4[%c0_18, %c0_19, %c0_20] : memref<1x18x128xf32, #tpu.memory_space<vmem>>, vector<1x16x128xf32>
    %c1_i32 = arith.constant 1 : i32
    %20 = tpu.dynamic_rotate %19 by %c1_i32 dim 2 : vector<1x16x128xf32>, i32 -> vector<1x16x128xf32>
    %21 = vector.broadcast %10 : f32 to vector<1x16x128xf32>
    %22 = arith.mulf %21, %20 : vector<1x16x128xf32>
    %23 = vector.broadcast %11 : f32 to vector<1x16x128xf32>
    %24 = arith.mulf %23, %19 : vector<1x16x128xf32>
    %25 = arith.addf %22, %24 : vector<1x16x128xf32>
    %c127_i32 = arith.constant 127 : i32
    %26 = tpu.dynamic_rotate %19 by %c127_i32 dim 2 : vector<1x16x128xf32>, i32 -> vector<1x16x128xf32>
    %27 = vector.broadcast %12 : f32 to vector<1x16x128xf32>
    %28 = arith.mulf %27, %26 : vector<1x16x128xf32>
    %29 = arith.addf %25, %28 : vector<1x16x128xf32>
    %c0_21 = arith.constant 0 : index
    %c1_22 = arith.constant 1 : index
    %c0_23 = arith.constant 0 : index
    %30 = vector.load %arg4[%c0_21, %c1_22, %c0_23] : memref<1x18x128xf32, #tpu.memory_space<vmem>>, vector<1x16x128xf32>
    %c1_i32_24 = arith.constant 1 : i32
    %31 = tpu.dynamic_rotate %30 by %c1_i32_24 dim 2 : vector<1x16x128xf32>, i32 -> vector<1x16x128xf32>
    %32 = vector.broadcast %13 : f32 to vector<1x16x128xf32>
    %33 = arith.mulf %32, %31 : vector<1x16x128xf32>
    %34 = arith.addf %29, %33 : vector<1x16x128xf32>
    %35 = vector.broadcast %14 : f32 to vector<1x16x128xf32>
    %36 = arith.mulf %35, %30 : vector<1x16x128xf32>
    %37 = arith.addf %34, %36 : vector<1x16x128xf32>
    %c127_i32_25 = arith.constant 127 : i32
    %38 = tpu.dynamic_rotate %30 by %c127_i32_25 dim 2 : vector<1x16x128xf32>, i32 -> vector<1x16x128xf32>
    %39 = vector.broadcast %15 : f32 to vector<1x16x128xf32>
    %40 = arith.mulf %39, %38 : vector<1x16x128xf32>
    %41 = arith.addf %37, %40 : vector<1x16x128xf32>
    %c0_26 = arith.constant 0 : index
    %c2_27 = arith.constant 2 : index
    %c0_28 = arith.constant 0 : index
    %42 = vector.load %arg4[%c0_26, %c2_27, %c0_28] : memref<1x18x128xf32, #tpu.memory_space<vmem>>, vector<1x16x128xf32>
    %c1_i32_29 = arith.constant 1 : i32
    %43 = tpu.dynamic_rotate %42 by %c1_i32_29 dim 2 : vector<1x16x128xf32>, i32 -> vector<1x16x128xf32>
    %44 = vector.broadcast %16 : f32 to vector<1x16x128xf32>
    %45 = arith.mulf %44, %43 : vector<1x16x128xf32>
    %46 = arith.addf %41, %45 : vector<1x16x128xf32>
    %47 = vector.broadcast %17 : f32 to vector<1x16x128xf32>
    %48 = arith.mulf %47, %42 : vector<1x16x128xf32>
    %49 = arith.addf %46, %48 : vector<1x16x128xf32>
    %c127_i32_30 = arith.constant 127 : i32
    %50 = tpu.dynamic_rotate %42 by %c127_i32_30 dim 2 : vector<1x16x128xf32>, i32 -> vector<1x16x128xf32>
    %51 = vector.broadcast %18 : f32 to vector<1x16x128xf32>
    %52 = arith.mulf %51, %50 : vector<1x16x128xf32>
    %53 = arith.addf %49, %52 : vector<1x16x128xf32>
    %54 = vector.extract_strided_slice %53 {offsets = [0, 0, 0], sizes = [1, 16, 16], strides = [1, 1, 1]} : vector<1x16x128xf32> to vector<1x16x16xf32>
    %c0_31 = arith.constant 0 : index
    %c0_32 = arith.constant 0 : index
    %c0_33 = arith.constant 0 : index
    %55 = vector.load %arg3[%c0_31, %c0_32, %c0_33] : memref<1x16x16xf32, #tpu.memory_space<vmem>>, vector<1x16x16xf32>
    tpu.vector_store %arg3[%c0_31, %c0_32, %c0_33], %54 {strides = array<i32>} : memref<1x16x16xf32, #tpu.memory_space<vmem>>, vector<1x16x16xf32>,
    return
  }
  func.func @transform_0(%arg0: i32) -> i32 {
    %c0_i32 = arith.constant 0 : i32
    %c0_i32_0 = arith.constant 0 : i32
    return %c0_i32 : i32
  }
  func.func @transform_1(%arg0: i32) -> (i32, i32, i32) {
    %c0_i32 = arith.constant 0 : i32
    %c0_i32_0 = arith.constant 0 : i32
    %c0_i32_1 = arith.constant 0 : i32
    return %arg0, %c0_i32, %c0_i32_0 : i32, i32, i32
  }
  func.func @transform_2(%arg0: i32) -> (i32, i32, i32) {
    %c0_i32 = arith.constant 0 : i32
    %c0_i32_0 = arith.constant 0 : i32
    %c0_i32_1 = arith.constant 0 : i32
    return %arg0, %c0_i32, %c0_i32_0 : i32, i32, i32
  }
}

</mosaic_0001>

<llo_original>
// kernel: tpu_custom_call.1
$region0: #{tpu_custom_call.1}
  #allocation0 [shape = 'u32[]', space=smem, size = 0x4, offset = 0x4, fixed_abs, tag = 'smem constant byte address 0x4 - core index']
  #allocation1 [shape = 'u32[144,128]{1,0:T(1,128)}', space=vmem, size = 0x12000, scoped, tag = 'internal scratch']
  #allocation2 [shape = 'f32[1,18,128]{2,1,0:T(8,128)}', space=vmem, size = 0x3000, scoped, tag = 'scratch operand']
  %s0 = inlined_call_operand.hbm [shape: f32[9], index: 0, kind: input, shape index: {}]
  %s1 = inlined_call_operand.hbm [shape: f32[2,16,16], index: 1, kind: input, shape index: {}]
  %s2 = inlined_call_operand.hbm [shape: f32[2,16,16], index: 2, kind: output, shape index: {}]
  %s3 = sld [smem:[#allocation0]]
  $region49: #{tpu_custom_call.1} parent=0
    _
  %s5 = ssub.s32 1, %s3
  %s6 = scalar_select 0, %s5, %s3
  $region1: #{tpu_custom_call.1} parent=0
    #allocation3 [shape = 'u8[512]{0}', space=smem, size = 0x200, scoped, tag = 'input window, operand 0, single buffered']
    #allocation4 [shape = 's32[2]{0}', space=sflag, size = 0x8, scoped, tag = 'scoped memory for tpu_custom_call.1']
    #allocation5 [shape = 's32[2]{0}', space=sflag, size = 0x8, scoped, tag = 'scoped memory for tpu_custom_call.1']
    #allocation6 [shape = 's32[2]{0}', space=sflag, size = 0x8, scoped, tag = 'scoped memory for tpu_custom_call.1']
    #allocation7 [shape = 'u8[16384]{0}', space=vmem, size = 0x4000, scoped, tag = 'input window, operand 1']
    #allocation8 [shape = 'u8[16384]{0}', space=vmem, size = 0x4000, scoped, tag = 'output window, operand 0']
    %7 = vsyncpa [#allocation6], 0
    %8 = vsyncpa [#allocation4], 0
    %s9 = scalar_lea.sflag [#allocation4], 1
    %10 = vsyncpa %s9, 0
    %11 = vsyncpa [#allocation5], 0
    %s12 = scalar_lea.sflag [#allocation5], 1
    %13 = vsyncpa %s12, 0
    loop: start=0, step=1, limit=4
    $region2: #{tpu_custom_call.1} parent=1 // loop_pre_header
      _
    $region3: #{tpu_custom_call.1} parent=1 // loop_header
      %s15 = sphi 0, %s19
      %p16 = scmp.ge.s32.totalorder %s15, 4
      %s23 = sphi 0, %s23
      %s25 = sphi 0, %s23
      %s26 = sphi 0, %s25
      %s40 = sphi 0, %s26
      %s46 = sphi 0, %s48
      %s49 = sphi 0, %s46
      %s50 = sphi 0, %s49
      %s66 = sphi 0, %s50
      %s72 = sphi 0, %s74
      %s75 = sphi 0, %s72
      %s76 = sphi 0, %s75
      %s92 = sphi 0, %s76
    $region4: #{tpu_custom_call.1} parent=1 // loop_header_branch
      %18 = sbr.rel (%p16) target = $region8
    $region5: #{tpu_custom_call.1} parent=1 // loop_body
      %s20 = ssub.s32 %s15, 1
      %s21 = ssub.s32 %s15, 2
      %s22 = sadd.s32 %s15, 1
      %s24 = sadd.s32 %s23, 1
      %p27 = scmp.eq.s32.totalorder %s15, 1
      %p28 = scmp.ne.s32.totalorder %s23, %s25
      %p29 = scmp.eq.s32.totalorder %s15, 0
      %p30 = por %p28, %p29
      %p31 = scmp.ne.s32.totalorder %s23, %s25
      %p32 = scmp.eq.s32.totalorder %s20, 1
      %p33 = por %p31, %p32
      %p34 = scmp.ne.s32.totalorder %s25, %s26
      %p35 = scmp.eq.s32.totalorder %s20, 0
      %p36 = por %p34, %p35
      %p37 = scmp.ne.s32.totalorder %s25, %s26
      %p38 = scmp.eq.s32.totalorder %s21, 1
      %p39 = por %p37, %p38
      %p41 = scmp.ne.s32.totalorder %s26, %s40
      %p42 = scmp.eq.s32.totalorder %s21, 0
      %p43 = por %p41, %p42
      %s44 = ssub.s32 %s15, %s22
      %p45 = scmp.eq.s32.totalorder %s44, 0
      %s47 = sadd.s32 %s46, 1
      %s48 = scalar_select %p45, %s46, %s47
      %p51 = pneg %p45
      %p52 = scmp.eq.s32.totalorder %s15, 1
      %p53 = por %p51, %p52
      %p54 = scmp.ne.s32.totalorder %s46, %s49
      %p55 = scmp.eq.s32.totalorder %s15, 0
      %p56 = por %p54, %p55
      %p57 = scmp.ne.s32.totalorder %s46, %s49
      %p58 = scmp.eq.s32.totalorder %s20, 1
      %p59 = por %p57, %p58
      %p60 = scmp.ne.s32.totalorder %s49, %s50
      %p61 = scmp.eq.s32.totalorder %s20, 0
      %p62 = por %p60, %p61
      %p63 = scmp.ne.s32.totalorder %s49, %s50
      %p64 = scmp.eq.s32.totalorder %s21, 1
      %p65 = por %p63, %p64
      %p67 = scmp.ne.s32.totalorder %s50, %s66
      %p68 = scmp.eq.s32.totalorder %s21, 0
      %p69 = por %p67, %p68
      %s70 = ssub.s32 %s15, %s22
      %p71 = scmp.eq.s32.totalorder %s70, 0
      %s73 = sadd.s32 %s72, 1
      %s74 = scalar_select %p71, %s72, %s73
      %p77 = pneg %p71
      %p78 = scmp.eq.s32.totalorder %s15, 1
      %p79 = por %p77, %p78
      %p80 = scmp.ne.s32.totalorder %s72, %s75
      %p81 = scmp.eq.s32.totalorder %s15, 0
      %p82 = por %p80, %p81
      %p83 = scmp.ne.s32.totalorder %s72, %s75
      %p84 = scmp.eq.s32.totalorder %s20, 1
      %p85 = por %p83, %p84
      %p86 = scmp.ne.s32.totalorder %s75, %s76
      %p87 = scmp.eq.s32.totalorder %s20, 0
      %p88 = por %p86, %p87
      %p89 = scmp.ne.s32.totalorder %s75, %s76
      %p90 = scmp.eq.s32.totalorder %s21, 1
      %p91 = por %p89, %p90
      %p93 = scmp.ne.s32.totalorder %s76, %s92
      %p94 = scmp.eq.s32.totalorder %s21, 0
      %p95 = por %p93, %p94
      %p96 = scmp.le.s32.totalorder 1, %s15
      %p97 = scmp.lt.s32.totalorder %s15, 3
      %p98 = pnand %p96, %p97
      %p99 = pneg %p98
      // Predicated region
      $region9: #{tpu_custom_call.1} parent=5 // pred_check
        _
      $region10: #{tpu_custom_call.1} parent=5 // pred_check_branch
        %101 = sbr.rel (%p98) target = $region12
      $region11: #{tpu_custom_call.1} parent=5 // pred_region
        %s102 = ssub.s32 %s15, 1
        // Predicated region
        $region13: #{tpu_custom_call.1} parent=11 // pred_check
          %p103 = pneg %p36
        $region14: #{tpu_custom_call.1} parent=11 // pred_check_branch
          %105 = sbr.rel (%p103) target = $region16
        $region15: #{tpu_custom_call.1} parent=11 // pred_region
          %s107 = ssub.s32 16, 16
          %108 = vsyncadd [#allocation6], %s107
          %111 = dma.hbm_to_smem %s0, 16, [#allocation3], [#allocation6]
        $region16: #{tpu_custom_call.1} parent=11 // pred_fallthru
          _
      $region12: #{tpu_custom_call.1} parent=5 // pred_fallthru
        _
      %p112 = scmp.lt.s32.totalorder %s15, 2
      // Predicated region
      $region17: #{tpu_custom_call.1} parent=5 // pred_check
        %p113 = pneg %p112
      $region18: #{tpu_custom_call.1} parent=5 // pred_check_branch
        %115 = sbr.rel (%p113) target = $region20
      $region19: #{tpu_custom_call.1} parent=5 // pred_region
        // Predicated region
        $region21: #{tpu_custom_call.1} parent=19 // pred_check
          %p116 = pneg %p56
        $region22: #{tpu_custom_call.1} parent=19 // pred_check_branch
          %118 = sbr.rel (%p116) target = $region24
        $region23: #{tpu_custom_call.1} parent=19 // pred_region
          %s119 = sand.u32 %s46, 1
          %s120 = scalar_lea.sflag [#allocation4], %s119
          %s121 = sand.u32 %s46, 1
          %s122 = smul.addr %s121, 16
          %s123 = scalar_lea.vmem [#allocation7], %s122
          %s125 = ssub.s32 256, 256
          %126 = vsyncadd %s120, %s125
          %s127 = smul.addr %s15, 2
          %s128 = smul.addr %s127, 128
          %s129 = scalar_lea.hbm %s1, %s128
          %s130 = sshll.u32 %s123, 4
          %s131 = int_to_ptr.vmem [resolvable:$true] %s130
          %136 = dma.hbm_to_vmem [thread:$0]  %s129, 256, %s131, %s120, 128, 128, 8
        $region24: #{tpu_custom_call.1} parent=19 // pred_fallthru
          _
      $region20: #{tpu_custom_call.1} parent=5 // pred_fallthru
        _
      %p137 = scmp.le.s32.totalorder 1, %s15
      %p138 = scmp.lt.s32.totalorder %s15, 3
      %p139 = pnand %p137, %p138
      %p140 = pneg %p139
      // Predicated region
      $region25: #{tpu_custom_call.1} parent=5 // pred_check
        _
      $region26: #{tpu_custom_call.1} parent=5 // pred_check_branch
        %142 = sbr.rel (%p139) target = $region28
      $region27: #{tpu_custom_call.1} parent=5 // pred_region
        %s143 = ssub.s32 %s15, 1
        // Predicated region
        $region29: #{tpu_custom_call.1} parent=27 // pred_check
          %p144 = pneg %p36
        $region30: #{tpu_custom_call.1} parent=27 // pred_check_branch
          %146 = sbr.rel (%p144) target = $region32
        $region31: #{tpu_custom_call.1} parent=27 // pred_region
          %147 = dma.done [#allocation6], 16
        $region32: #{tpu_custom_call.1} parent=27 // pred_fallthru
          _
        %s148 = sand.u32 %s49, 1
        %s149 = scalar_lea.sflag [#allocation4], %s148
        %s150 = sand.u32 %s49, 1
        %s151 = smul.addr %s150, 16
        %s152 = scalar_lea.vmem [#allocation7], %s151
        // Predicated region
        $region33: #{tpu_custom_call.1} parent=27 // pred_check
          %p153 = pneg %p62
        $region34: #{tpu_custom_call.1} parent=27 // pred_check_branch
          %155 = sbr.rel (%p153) target = $region36
        $region35: #{tpu_custom_call.1} parent=27 // pred_region
          %156 = dma.done %s149, 256
        $region36: #{tpu_custom_call.1} parent=27 // pred_fallthru
          _
        %157 = sfence
        %p158 = pneg %p36
        %p159 = pneg %p33
        %s160 = sand.u32 %s49, 1
        %s161 = scalar_lea.sflag [#allocation4], %s160
        %s162 = sand.u32 %s49, 1
        %s163 = smul.addr %s162, 16
        %s164 = scalar_lea.vmem [#allocation7], %s163
        %p165 = pneg %p62
        %p166 = pneg %p59
        %p167 = pneg %p88
        %p168 = pneg %p85
        %s169 = sand.u32 %s75, 1
        %s170 = scalar_lea.sflag [#allocation5], %s169
        %s171 = sand.u32 %s75, 1
        %s172 = smul.addr %s171, 16
        %s173 = scalar_lea.vmem [#allocation8], %s172
        %174 = vst [vmem:[#allocation2] sm:$0x1] 0.0
        %175 = vst [vmem:[#allocation2 + $0x11] sm:$0x1] 0.0
        %vm176 = vcmask 138368
        %177 = vst.msk [vmem:[#allocation2] sm:$0xff] %vm176, 0.0
        %178 = vst.msk [vmem:[#allocation2 + $0x8] sm:$0xff] %vm176, 0.0
        %vm179 = vcmask 132224
        %180 = vst.msk [vmem:[#allocation2 + $0x10] sm:$0x3] %vm179, 0.0
        %vm181 = vcmask 1048568
        %182 = vst.msk [vmem:[#allocation2] sm:$0xff] %vm181, 0.0
        %183 = vst.msk [vmem:[#allocation2 + $0x8] sm:$0xff] %vm181, 0.0
        %vm184 = vcmask 1042424
        %185 = vst.msk [vmem:[#allocation2 + $0x10] sm:$0x3] %vm184, 0.0
        %v186 = vld [vmem:[%s152] sm:$0xff]
        %v187 = vld [vmem:[%s152 + $0x8] sm:$0xff]
        %vm188 = vcmask 130048
        %189 = vst.msk [vmem:[#allocation2 + $0x1] sm:$0xff] %vm188, %v186
        %190 = vst.msk [vmem:[#allocation2 + $0x9] sm:$0xff] %vm188, %v187
        %s191 = sld [smem:[#allocation3]]
        %s192 = sld [smem:[#allocation3 + $0x1]]
        %s193 = sld [smem:[#allocation3 + $0x2]]
        %s194 = sld [smem:[#allocation3 + $0x3]]
        %s195 = sld [smem:[#allocation3 + $0x4]]
        %s196 = sld [smem:[#allocation3 + $0x5]]
        %s197 = sld [smem:[#allocation3 + $0x6]]
        %s198 = sld [smem:[#allocation3 + $0x7]]
        %s199 = sld [smem:[#allocation3 + $0x8]]
        %v200 = vld [vmem:[#allocation2] sm:$0xff]
        %v201 = vld [vmem:[#allocation2 + $0x8] sm:$0xff]
        %202 = vrot.lane.b32.xlu0 %v200, 1
        %v203 = vpop.permute.xlu0 %202
        %204 = vrot.lane.b32.xlu0 %v201, 1
        %v205 = vpop.permute.xlu0 %204
        %v206 = vstv %s191
        %v207 = vmul.f32 %v206, %v203
        %v208 = vmul.f32 %v206, %v205
        %v209 = vstv %s192
        %v210 = vmul.f32 %v209, %v200
        %v211 = vmul.f32 %v209, %v201
        %v212 = vadd.f32 %v207, %v210
        %v213 = vadd.f32 %v208, %v211
        %214 = vrot.lane.b32.xlu0 %v200, 127
        %v215 = vpop.permute.xlu0 %214
        %216 = vrot.lane.b32.xlu0 %v201, 127
        %v217 = vpop.permute.xlu0 %216
        %v218 = vstv %s193
        %v219 = vmul.f32 %v218, %v215
        %v220 = vmul.f32 %v218, %v217
        %v221 = vadd.f32 %v212, %v219
        %v222 = vadd.f32 %v213, %v220
        %v223 = vld [vmem:[#allocation2 + $0x1] sm:$0xff]
        %v224 = vld [vmem:[#allocation2 + $0x9] sm:$0xff]
        %225 = vrot.lane.b32.xlu0 %v223, 1
        %v226 = vpop.permute.xlu0 %225
        %227 = vrot.lane.b32.xlu0 %v224, 1
        %v228 = vpop.permute.xlu0 %227
        %v229 = vstv %s194
        %v230 = vmul.f32 %v229, %v226
        %v231 = vmul.f32 %v229, %v228
        %v232 = vadd.f32 %v221, %v230
        %v233 = vadd.f32 %v222, %v231
        %v234 = vstv %s195
        %v235 = vmul.f32 %v234, %v223
        %v236 = vmul.f32 %v234, %v224
        %v237 = vadd.f32 %v232, %v235
        %v238 = vadd.f32 %v233, %v236
        %239 = vrot.lane.b32.xlu0 %v223, 127
        %v240 = vpop.permute.xlu0 %239
        %241 = vrot.lane.b32.xlu0 %v224, 127
        %v242 = vpop.permute.xlu0 %241
        %v243 = vstv %s196
        %v244 = vmul.f32 %v243, %v240
        %v245 = vmul.f32 %v243, %v242
        %v246 = vadd.f32 %v237, %v244
        %v247 = vadd.f32 %v238, %v245
        %v248 = vld [vmem:[#allocation2 + $0x2] sm:$0xff]
        %v249 = vld [vmem:[#allocation2 + $0xa] sm:$0xff]
        %250 = vrot.lane.b32.xlu0 %v248, 1
        %v251 = vpop.permute.xlu0 %250
        %252 = vrot.lane.b32.xlu0 %v249, 1
        %v253 = vpop.permute.xlu0 %252
        %v254 = vstv %s197
        %v255 = vmul.f32 %v254, %v251
        %v256 = vmul.f32 %v254, %v253
        %v257 = vadd.f32 %v246, %v255
        %v258 = vadd.f32 %v247, %v256
        %v259 = vstv %s198
        %v260 = vmul.f32 %v259, %v248
        %v261 = vmul.f32 %v259, %v249
        %v262 = vadd.f32 %v257, %v260
        %v263 = vadd.f32 %v258, %v261
        %264 = vrot.lane.b32.xlu0 %v248, 127
        %v265 = vpop.permute.xlu0 %264
        %266 = vrot.lane.b32.xlu0 %v249, 127
        %v267 = vpop.permute.xlu0 %266
        %v268 = vstv %s199
        %v269 = vmul.f32 %v268, %v265
        %v270 = vmul.f32 %v268, %v267
        %v271 = vadd.f32 %v262, %v269
        %v272 = vadd.f32 %v263, %v270
        %273 = vst.msk [vmem:[%s173] sm:$0xff] %vm188, %v271
        %274 = vst.msk [vmem:[%s173 + $0x8] sm:$0xff] %vm188, %v272
        %s275 = sand.u32 %s75, 1
        %s276 = scalar_lea.sflag [#allocation5], %s275
        %s277 = sand.u32 %s75, 1
        %s278 = smul.addr %s277, 16
        %s279 = scalar_lea.vmem [#allocation8], %s278
        // Predicated region
        $region37: #{tpu_custom_call.1} parent=27 // pred_check
          %p280 = pneg %p85
        $region38: #{tpu_custom_call.1} parent=27 // pred_check_branch
          %282 = sbr.rel (%p280) target = $region40
        $region39: #{tpu_custom_call.1} parent=27 // pred_region
          %s284 = ssub.s32 256, 256
          %285 = vsyncadd %s276, %s284
          %s286 = smul.addr %s20, 2
          %s287 = smul.addr %s286, 128
          %s288 = scalar_lea.hbm %s2, %s287
          %s289 = sshll.u32 %s279, 4
          %s290 = int_to_ptr.vmem [resolvable:$true] %s289
          %295 = dma.vmem_to_hbm [thread:$0]  %s290, 256, %s288, %s276, 128, 128, 8
        $region40: #{tpu_custom_call.1} parent=27 // pred_fallthru
          _
      $region28: #{tpu_custom_call.1} parent=5 // pred_fallthru
        _
      %p296 = scmp.le.s32.totalorder 2, %s15
      // Predicated region
      $region41: #{tpu_custom_call.1} parent=5 // pred_check
        %p297 = pneg %p296
      $region42: #{tpu_custom_call.1} parent=5 // pred_check_branch
        %299 = sbr.rel (%p297) target = $region44
      $region43: #{tpu_custom_call.1} parent=5 // pred_region
        %s300 = ssub.s32 %s15, 2
        // Predicated region
        $region45: #{tpu_custom_call.1} parent=43 // pred_check
          %p301 = pneg %p91
        $region46: #{tpu_custom_call.1} parent=43 // pred_check_branch
          %303 = sbr.rel (%p301) target = $region48
        $region47: #{tpu_custom_call.1} parent=43 // pred_region
          %s304 = sand.u32 %s76, 1
          %s305 = scalar_lea.sflag [#allocation5], %s304
          %s306 = sand.u32 %s76, 1
          %s307 = smul.addr %s306, 16
          %s308 = scalar_lea.vmem [#allocation8], %s307
          %309 = dma.done %s305, 256
        $region48: #{tpu_custom_call.1} parent=43 // pred_fallthru
          _
      $region44: #{tpu_custom_call.1} parent=5 // pred_fallthru
        _
    $region6: #{tpu_custom_call.1} parent=1 // loop_footer
      %s19 = sadd.s32 1, %s15
    $region7: #{tpu_custom_call.1} parent=1 // loop_footer_branch
      %14 = sbr.rel target = $region3
    $region8: #{tpu_custom_call.1} parent=1 // loop_exit
      _
    %310 = vsyncpa [#allocation4], 1
    %s311 = scalar_lea.sflag [#allocation4], 1
    %312 = vsyncpa %s311, 1
    %313 = vsyncpa [#allocation5], 1
    %s314 = scalar_lea.sflag [#allocation5], 1
    %315 = vsyncpa %s314, 1
    %316 = vsyncpa [#allocation6], 1
    %s317 = scalar_lea.sflag [#allocation6], 1
    %318 = vsyncpa %s317, 1

</llo_original>
